<compile_context>
chip_gen: v6e
topology: v6e:2x2x1
jax: 0.10.0
libtpu: 0.0.40
codegen_flags: <defaults>
</compile_context>

<pallas_src>
import random

import jax
import jax.numpy as jnp
from jax.experimental import pallas as pl
from jax.experimental.pallas import tpu as pltpu


def _make_leaky_relu_kernel(negative_slope):
    slope = float(negative_slope)  # trace-time constant, no SMEM operand

    if slope <= 1.0:
        # 2 VALU ops (vmul + vmax) instead of 3 (vmul + vcmp + vsel).
        def kernel(x_ref, o_ref):
            x = x_ref[...]
            o_ref[...] = jnp.maximum(x, x * slope)
    else:
        def kernel(x_ref, o_ref):
            x = x_ref[...]
            o_ref[...] = jnp.where(x >= 0, x, x * slope)

    return kernel


_LANE_CANDIDATES = (4096, 2048, 1024, 512, 256, 128)


def _sublanes_for_dtype(dtype):
    itemsize = jnp.dtype(dtype).itemsize
    return {4: 8, 2: 16, 1: 32}.get(itemsize, 8)


def _chip_params():
    """Per-generation tile/VMEM budget.

    v7x: 64 MiB VMEM per TensorCore, 2 TCs -> keep 4x tile (in + out, each
         double-buffered) plus compiler scratch under ~48 MiB.
    v5e/v6e: 128 MiB physical VMEM, single TC -> 8 MiB tiles with a 64 MiB
         scoped limit (the 16/32 MiB defaults would otherwise shrink buffers).
    """
    try:
        kind = jax.devices()[0].device_kind.lower()
    except Exception:
        kind = ""
    if "v7" in kind:
        return {"is_v7": True,
                "target_tile_bytes": 8 << 20,
                "vmem_limit_bytes": 48 << 20}
    return {"is_v7": False,
            "target_tile_bytes": 8 << 20,
            "vmem_limit_bytes": 64 << 20}


def _elementwise_ref(x, slope):
    if slope <= 1.0:
        return jnp.maximum(x, x * slope)
    return jnp.where(x >= 0, x, x * slope)


def _leaky_relu_2d(x2d, slope, params):
    rows, lanes = x2d.shape
    dtype = x2d.dtype
    itemsize = jnp.dtype(dtype).itemsize
    sublanes = _sublanes_for_dtype(dtype)

    row_bytes = itemsize * lanes
    target_rows = max(
        sublanes,
        (params["target_tile_bytes"] // row_bytes // sublanes) * sublanes,
    )

    if rows <= target_rows:
        block_rows = rows  # full-dims block: always legal
        # v7x only: both TensorCores share the "parallel" axis -- split in
        # two iff both halves stay >= ~2 MiB and sublane-aligned.
        if params["is_v7"] and rows >= 2 * sublanes:
            half = (((rows + 1) // 2 + sublanes - 1) // sublanes) * sublanes
            if half < rows and half * row_bytes >= (2 << 20):
                block_rows = half
    else:
        # v5e/v6e have a single TC: the grid is a serial loop, so never
        # shrink below target_rows just to add steps.
        block_rows = target_rows

    grid = (pl.cdiv(rows, block_rows),)
    n_elems = rows * lanes

    return pl.pallas_call(
        _make_leaky_relu_kernel(slope),
        out_shape=jax.ShapeDtypeStruct((rows, lanes), dtype),
        grid=grid,
        in_specs=[pl.BlockSpec((block_rows, lanes), lambda i: (i, 0))],
        out_specs=pl.BlockSpec((block_rows, lanes), lambda i: (i, 0)),
        compiler_params=pltpu.CompilerParams(
            dimension_semantics=("parallel",),
            vmem_limit_bytes=params["vmem_limit_bytes"],
        ),
        cost_estimate=pl.CostEstimate(
            flops=2 * n_elems,
            transcendentals=0,
            bytes_accessed=2 * n_elems * itemsize,
        ),
    )(x2d)


def leaky_relu_pallas(x, negative_slope):
    """Applies LeakyReLU elementwise to x (any shape), matching
    torch.nn.LeakyReLU(negative_slope) forward semantics."""
    orig_shape = x.shape
    dtype = x.dtype
    slope = float(negative_slope)

    flat = x.reshape(-1)
    n = flat.shape[0]
    if n == 0:
        return x

    params = _chip_params()
    sublanes = _sublanes_for_dtype(dtype)

    # Widest lane-dense view that needs no padding (common / test case).
    lanes = None
    for cand in _LANE_CANDIDATES:
        if n % cand == 0:
            lanes = cand
            break

    if lanes is not None:
        out2d = _leaky_relu_2d(flat.reshape(n // lanes, lanes), slope, params)
        return out2d.reshape(orig_shape)

    # n not a multiple of 128: kernel on the (sublanes*128)-aligned bulk,
    # tiny tail (< sublanes*128 elements) finished with plain jnp ops.
    # No full-array pad / slice copies around the bandwidth-bound kernel.
    chunk = sublanes * 128
    bulk = (n // chunk) * chunk
    if bulk == 0:
        # Whole input is tiny and unaligned: one full-dims block.
        out2d = _leaky_relu_2d(flat.reshape(1, n), slope, params)
        return out2d.reshape(orig_shape)

    head = _leaky_relu_2d(flat[:bulk].reshape(bulk // 128, 128), slope, params)
    tail = _elementwise_ref(flat[bulk:], slope)
    return jnp.concatenate([head.reshape(-1), tail]).reshape(orig_shape)


if __name__ == "__main__":
    # Deterministic "parameter" init: the module draws negative_slope from
    # random.random(); seed it so the value is reproducible.
    random.seed(0)
    negative_slope = random.random()

    key = jax.random.PRNGKey(0)
    x = jax.random.normal(key, (2, 4, 16, 16), dtype=jnp.float32)  # NCHW

    out = leaky_relu_pallas(x, negative_slope)
    out = jax.block_until_ready(out)

    # Correctness check against pure-JAX reference.
    ref = jnp.where(x >= 0, x, x * negative_slope)
    assert out.shape == x.shape
    assert out.dtype == x.dtype
    assert jnp.allclose(out, ref, atol=1e-6), "mismatch vs reference"

    print("KERNEL_OK")
</pallas_src>

<mosaic_0001>
module attributes {stable_mosaic.version = 11 : i64} {
  func.func @kernel(%arg0: i32, %arg1: memref<1x2048xf32, #tpu.memory_space<vmem>>, %arg2: memref<1x2048xf32, #tpu.memory_space<vmem>>) attributes {dimension_semantics = [#tpu.dimension_semantics<parallel>], iteration_bounds = array<i64: 1>, scalar_prefetch = 0 : i64, scratch_operands = 0 : i64, tpu.core_type = #tpu.core_type<tc>, window_params = [{transform_indices = @transform_0, window_bounds = array<i64: 1, 2048>}, {transform_indices = @transform_1, window_bounds = array<i64: 1, 2048>}]} {
    %c0 = arith.constant 0 : index
    %c0_0 = arith.constant 0 : index
    %0 = vector.load %arg1[%c0, %c0_0] : memref<1x2048xf32, #tpu.memory_space<vmem>>, vector<1x2048xf32>
    %cst = arith.constant 0.844421863 : f32
    %1 = vector.broadcast %cst : f32 to vector<1x2048xf32>
    %2 = arith.mulf %0, %1 : vector<1x2048xf32>
    %3 = arith.maximumf %0, %2 : vector<1x2048xf32>
    %c0_1 = arith.constant 0 : index
    %c0_2 = arith.constant 0 : index
    %4 = vector.load %arg2[%c0_1, %c0_2] : memref<1x2048xf32, #tpu.memory_space<vmem>>, vector<1x2048xf32>
    tpu.vector_store %arg2[%c0_1, %c0_2], %3 {strides = array<i32>} : memref<1x2048xf32, #tpu.memory_space<vmem>>, vector<1x2048xf32>,
    return
  }
  func.func @transform_0(%arg0: i32) -> (i32, i32) {
    %c0_i32 = arith.constant 0 : i32
    %c0_i32_0 = arith.constant 0 : i32
    return %arg0, %c0_i32 : i32, i32
  }
  func.func @transform_1(%arg0: i32) -> (i32, i32) {
    %c0_i32 = arith.constant 0 : i32
    %c0_i32_0 = arith.constant 0 : i32
    return %arg0, %c0_i32 : i32, i32
  }
}

</mosaic_0001>

<llo_original>
// kernel: tpu_custom_call.1
$region0: #{tpu_custom_call.1}
  #allocation0 [shape = 'u32[]', space=smem, size = 0x4, offset = 0x4, fixed_abs, tag = 'smem constant byte address 0x4 - core index']
  #allocation1 [shape = 'u32[144,128]{1,0:T(1,128)}', space=vmem, size = 0x12000, scoped, tag = 'internal scratch']
  %s0 = inlined_call_operand.hbm [shape: f32[1,2048], index: 0, kind: input, shape index: {}]
  %s1 = inlined_call_operand.hbm [shape: f32[1,2048], index: 1, kind: output, shape index: {}]
  %s2 = sld [smem:[#allocation0]]
  $region18: #{tpu_custom_call.1} parent=0
    _
  %s4 = ssub.s32 1, %s2
  %s5 = scalar_select 0, %s4, %s2
  $region1: #{tpu_custom_call.1} parent=0
    #allocation2 [shape = 'u8[8192]{0}', space=vmem, size = 0x2000, scoped, tag = 'input window, operand 0, single buffered']
    #allocation3 [shape = 's32[1]{0}', space=sflag, size = 0x4, scoped, tag = 'scoped memory for tpu_custom_call.1']
    #allocation4 [shape = 's32[1]{0}', space=sflag, size = 0x4, scoped, tag = 'scoped memory for tpu_custom_call.1']
    #allocation5 [shape = 'u8[8192]{0}', space=vmem, size = 0x2000, scoped, tag = 'output window, operand 0, single buffered']
    %6 = vsyncpa [#allocation3], 0
    %7 = vsyncpa [#allocation4], 0
    // Predicated region
    $region2: #{tpu_custom_call.1} parent=1 // pred_check
      _
    $region3: #{tpu_custom_call.1} parent=1 // pred_check_branch
      %9 = sbr.rel (0) target = $region5
    $region4: #{tpu_custom_call.1} parent=1 // pred_region
      %s11 = ssub.s32 256, 256
      %12 = vsyncadd [#allocation3], %s11
      %s14 = sshll.u32 [#allocation2], 4
      %s15 = int_to_ptr.vmem [resolvable:$true] %s14
      %17 = dma.hbm_to_vmem [thread:$0]  %s0, 256, %s15, [#allocation3]
    $region5: #{tpu_custom_call.1} parent=1 // pred_fallthru
      _
    // Predicated region
    $region6: #{tpu_custom_call.1} parent=1 // pred_check
      _
    $region7: #{tpu_custom_call.1} parent=1 // pred_check_branch
      %19 = sbr.rel (0) target = $region9
    $region8: #{tpu_custom_call.1} parent=1 // pred_region
      %20 = dma.done [#allocation3], 256
    $region9: #{tpu_custom_call.1} parent=1 // pred_fallthru
      _
    %v21 = vld [vmem:[#allocation2] sm:$0xff]
    %v22 = vld [vmem:[#allocation2 + $0x8] sm:$0xff]
    %v23 = vmul.f32 %v21, 0.84442186
    %v24 = vmul.f32 %v22, 0.84442186
    %v25 = vmax.f32 %v21, %v23
    %v26 = vmax.f32 %v22, %v24
    %27 = vst [vmem:[#allocation5] sm:$0xff] %v25
    %28 = vst [vmem:[#allocation5 + $0x8] sm:$0xff] %v26
    // Predicated region
    $region10: #{tpu_custom_call.1} parent=1 // pred_check
      _
    $region11: #{tpu_custom_call.1} parent=1 // pred_check_branch
      %30 = sbr.rel (0) target = $region13
    $region12: #{tpu_custom_call.1} parent=1 // pred_region
      %s32 = ssub.s32 256, 256
      %33 = vsyncadd [#allocation4], %s32
      %s35 = sshll.u32 [#allocation5], 4
      %s36 = int_to_ptr.vmem [resolvable:$true] %s35
      %38 = dma.vmem_to_hbm [thread:$0]  %s36, 256, %s1, [#allocation4]
    $region13: #{tpu_custom_call.1} parent=1 // pred_fallthru
      _
    // Predicated region
    $region14: #{tpu_custom_call.1} parent=1 // pred_check
      _
    $region15: #{tpu_custom_call.1} parent=1 // pred_check_branch
      %40 = sbr.rel (0) target = $region17
    $region16: #{tpu_custom_call.1} parent=1 // pred_region
      %41 = dma.done [#allocation4], 256
    $region17: #{tpu_custom_call.1} parent=1 // pred_fallthru
      _
    %42 = vsyncpa [#allocation3], 1
    %43 = vsyncpa [#allocation4], 1

</llo_original>
